<compile_context>
chip_gen: v6e
topology: v6e:2x2x1
jax: 0.10.0
libtpu: 0.0.40
codegen_flags: <defaults>
</compile_context>

<pallas_src>
import functools

import jax
import jax.numpy as jnp
from jax.experimental import pallas as pl
from jax.experimental.pallas import tpu as pltpu


def _conv_stats_kernel(p_ref, w_ref, y_ref, sum_ref, ssq_ref, *,
                       block_m, core1_start, core1_col_lo, m_valid):
    """Pass 1: conv matmul per M-tile; spill y (bf16); per-lane sum / sum-of-squares."""
    c = pl.program_id(0)   # core split ("parallel")
    t = pl.program_id(1)   # tiles within a core ("arbitrary")

    @pl.when(t == 0)
    def _init():
        sum_ref[...] = jnp.zeros_like(sum_ref)
        ssq_ref[...] = jnp.zeros_like(ssq_ref)

    # [Cout, K] @ [K, TM] -> [Cout, TM]  (bf16 operands, f32 MXU accumulation)
    y = jnp.dot(w_ref[...], p_ref[...], preferred_element_type=jnp.float32)
    y_ref[...] = y.astype(y_ref.dtype)

    # Global output-column index of every lane of this tile.
    lt = c * core1_start + t                                   # logical tile index
    col = jax.lax.broadcasted_iota(jnp.int32, y.shape, 1) + lt * block_m
    # Keep valid columns only; core 1 additionally skips the overlap tile.
    keep = (col < m_valid) & (col >= c * core1_col_lo)
    ym = jnp.where(keep, y, 0.0)
    # Per-lane partial sums (pure VPU adds); final lane reduction happens in JAX.
    sum_ref[...] += ym[None]
    ssq_ref[...] += (ym * ym)[None]


def _bn_prelu_kernel(y_ref, par_ref, o_ref):
    """Pass 2: read bf16 conv result, fused BN affine + PReLU, lane-dense store."""
    y = y_ref[...].astype(jnp.float32)                  # [Cout, TM]
    z = y * par_ref[0] + par_ref[1]                     # per-channel scale / shift
    o_ref[...] = jnp.where(z >= 0.0, z, par_ref[2] * z).astype(o_ref.dtype)


def conv_block_forward(x, conv_w, conv_b, bn_gamma, bn_beta, prelu_a, *,
                       kernel_size=(5, 2), stride=(2, 1), padding=(0, 1),
                       causal=True, block_m=4096, eps=1e-5):
    """x: [N, C_in, H, W] (NCHW, like PyTorch). Returns [N, C_out, H_out, W_out']."""
    # conv_b is accepted for API parity but unused: a per-channel bias added before
    # training-mode BatchNorm is exactly cancelled by the mean subtraction.
    del conv_b

    N, Cin, H, W = x.shape
    Cout = conv_w.shape[0]
    KH, KW = kernel_size
    SH, SW = stride
    PH, PW = padding
    assert block_m % 128 == 0, "block_m must be a multiple of 128 (lane width)"

    Ho = (H + 2 * PH - KH) // SH + 1
    Wo = (W + 2 * PW - KW) // SW + 1
    # Causal slice x[:, :, :, :-1] after conv == only compute the first Wo-1 columns.
    Wc = Wo - 1 if causal else Wo
    K = Cin * KH * KW
    M = N * Ho * Wc

    # ---- im2col glue (plain JAX), bf16 from the start, emitted as [K, M] ---------
    # K ordered (Cin, KH, KW) to match conv_w.reshape(Cout, K).
    x_pad = jnp.pad(x.astype(jnp.bfloat16), ((0, 0), (0, 0), (PH, PH), (PW, PW)))
    cols = []
    for kh in range(KH):
        for kw in range(KW):
            cols.append(x_pad[:, :, kh: kh + SH * (Ho - 1) + 1: SH,
                                    kw: kw + SW * (Wc - 1) + 1: SW])   # [N, Cin, Ho, Wc]
    patch = jnp.stack(cols, axis=2)                                    # [N, Cin, KH*KW, Ho, Wc]
    patches_t = jnp.transpose(patch, (1, 2, 0, 3, 4)).reshape(K, M)    # [K, M] bf16

    wmat = conv_w.reshape(Cout, K).astype(jnp.bfloat16)                # [Cout, K]

    # Tile bookkeeping (no padding of M; ragged last tile is masked in-kernel).
    num_tiles = pl.cdiv(M, block_m)
    tpc = pl.cdiv(num_tiles, 2)          # tiles per core
    core1_start = num_tiles - tpc        # core 1's first logical tile (may overlap core 0)
    core1_col_lo = tpc * block_m         # columns below this are core 0's in the stats

    # ---- Pass 1: conv matmul, spill bf16 y, per-channel/per-lane sum & sum-sq -----
    stats_kernel = functools.partial(
        _conv_stats_kernel, block_m=block_m, core1_start=core1_start,
        core1_col_lo=core1_col_lo, m_valid=M)

    y_bf, sums, ssqs = pl.pallas_call(
        stats_kernel,
        out_shape=(jax.ShapeDtypeStruct((Cout, M), jnp.bfloat16),
                   jax.ShapeDtypeStruct((2, Cout, block_m), jnp.float32),
                   jax.ShapeDtypeStruct((2, Cout, block_m), jnp.float32)),
        grid=(2, tpc),
        in_specs=[
            pl.BlockSpec((K, block_m), lambda c, t: (0, c * core1_start + t)),
            pl.BlockSpec((Cout, K), lambda c, t: (0, 0)),
        ],
        out_specs=(
            pl.BlockSpec((Cout, block_m), lambda c, t: (0, c * core1_start + t)),
            pl.BlockSpec((1, Cout, block_m), lambda c, t: (c, 0, 0)),   # per-core accumulators
            pl.BlockSpec((1, Cout, block_m), lambda c, t: (c, 0, 0)),
        ),
        compiler_params=pltpu.CompilerParams(
            dimension_semantics=("parallel", "arbitrary"),
            vmem_limit_bytes=32 << 20),
        cost_estimate=pl.CostEstimate(
            flops=2 * Cout * K * 2 * tpc * block_m,
            transcendentals=0,
            bytes_accessed=2 * K * M + 2 * Cout * K + 2 * Cout * M
                           + 2 * 2 * Cout * block_m * 4),
    )(patches_t, wmat)

    # Tiny per-channel math in plain JAX.
    count = jnp.float32(M)                                 # TRUE batch count
    sum_c = jnp.sum(sums, axis=(0, 2))                     # [Cout]
    ssq_c = jnp.sum(ssqs, axis=(0, 2))
    mean = sum_c / count
    var = jnp.maximum(ssq_c / count - mean * mean, 0.0)    # biased var (training BN)
    inv_std = jax.lax.rsqrt(var + eps)
    g = bn_gamma.astype(jnp.float32)
    scale = g * inv_std
    shift = bn_beta.astype(jnp.float32) - mean * scale
    alpha = jnp.broadcast_to(jnp.asarray(prelu_a, jnp.float32).reshape(-1), (Cout,))
    params = jnp.stack([scale, shift, alpha]).reshape(3, Cout, 1)

    # ---- Pass 2: read y, fused normalize + PReLU, lane-dense f32 store ------------
    # (Output kept f32 for dtype parity with the PyTorch module; switch to bf16
    #  downstream if tolerated to halve the writeback.)
    out_t = pl.pallas_call(
        _bn_prelu_kernel,
        out_shape=jax.ShapeDtypeStruct((Cout, M), jnp.float32),
        grid=(num_tiles,),
        in_specs=[
            pl.BlockSpec((Cout, block_m), lambda t: (0, t)),
            pl.BlockSpec((3, Cout, 1), lambda t: (0, 0, 0)),
        ],
        out_specs=pl.BlockSpec((Cout, block_m), lambda t: (0, t)),
        compiler_params=pltpu.CompilerParams(
            dimension_semantics=("parallel",),
            vmem_limit_bytes=32 << 20),
        cost_estimate=pl.CostEstimate(
            flops=5 * Cout * num_tiles * block_m,
            transcendentals=0,
            bytes_accessed=2 * Cout * M + 4 * Cout * M + 3 * Cout * 4),
    )(y_bf, params)

    # [Cout, M] -> [Cout, N, Ho, Wc] -> NCHW (leading-axis swap, minor dims untouched).
    out = out_t.reshape(Cout, N, Ho, Wc)
    return jnp.transpose(out, (1, 0, 2, 3))


if __name__ == "__main__":
    key = jax.random.PRNGKey(0)
    k_x, k_x2, k_w, k_b = jax.random.split(key, 4)

    N, Cin, Cout, KH, KW = 2, 4, 8, 5, 2

    conv_w = jax.random.normal(k_w, (Cout, Cin, KH, KW), dtype=jnp.float32) * 0.1
    conv_b = jax.random.normal(k_b, (Cout,), dtype=jnp.float32) * 0.1
    bn_gamma = jnp.ones((Cout,), dtype=jnp.float32)   # BatchNorm2d defaults
    bn_beta = jnp.zeros((Cout,), dtype=jnp.float32)
    prelu_a = jnp.array([0.25], dtype=jnp.float32)    # nn.PReLU() default (1 parameter)

    def reference(x):
        """Pure-JAX reference (bf16 conv inputs, f32 accumulation, training-mode BN)."""
        xb = x.astype(jnp.bfloat16)
        wb = conv_w.astype(jnp.bfloat16)
        y = jax.lax.conv_general_dilated(
            xb, wb, window_strides=(2, 1), padding=((0, 0), (1, 1)),
            dimension_numbers=("NCHW", "OIHW", "NCHW"),
            preferred_element_type=jnp.float32)
        y = y + conv_b.reshape(1, -1, 1, 1)
        y = y[:, :, :, :-1]                                       # causal slice
        mean = y.mean(axis=(0, 2, 3), keepdims=True)
        var = ((y - mean) ** 2).mean(axis=(0, 2, 3), keepdims=True)
        z = (y - mean) * jax.lax.rsqrt(var + 1e-5)
        z = z * bn_gamma.reshape(1, -1, 1, 1) + bn_beta.reshape(1, -1, 1, 1)
        return jnp.where(z >= 0, z, prelu_a[0] * z)

    # Demo uses small block_m so the tiny shapes still exercise: (a) an even
    # multi-tile grid, (b) a single duplicated tile shared by both cores, and
    # (c) an odd tile count whose overlap tile must be excluded from core 1's
    # statistics.  Real workloads should use the default block_m=4096.
    cases = [
        (jax.random.normal(k_x, (N, Cin, 16, 16), dtype=jnp.float32), 128),   # 2 tiles
        (jax.random.normal(k_x, (N, Cin, 16, 16), dtype=jnp.float32), 256),   # 1 tile, dup
        (jax.random.normal(k_x2, (N, Cin, 16, 24), dtype=jnp.float32), 128),  # 3 tiles, odd
    ]
    for x, bm in cases:
        fwd = jax.jit(functools.partial(conv_block_forward, causal=True, block_m=bm))
        out = fwd(x, conv_w, conv_b, bn_gamma, bn_beta, prelu_a)
        jax.block_until_ready(out)
        # H_out = (16-5)//2+1 = 6, W_out' = (W+2-2)+1-1 = W
        assert out.shape == (N, Cout, 6, x.shape[3]), out.shape
        assert bool(jnp.all(jnp.isfinite(out)))
        ref = reference(x)
        err = float(jnp.max(jnp.abs(out - ref)))
        assert err < 8e-2, f"max abs err {err} (block_m={bm}, shape={x.shape})"
    print("KERNEL_OK")
</pallas_src>

<mosaic_0001>
module attributes {stable_mosaic.version = 11 : i64} {
  func.func @_conv_stats_kernel(%arg0: i32, %arg1: i32, %arg2: memref<40x128xbf16, #tpu.memory_space<vmem>>, %arg3: memref<8x40xbf16, #tpu.memory_space<vmem>>, %arg4: memref<8x128xbf16, #tpu.memory_space<vmem>>, %arg5: memref<1x8x128xf32, #tpu.memory_space<vmem>>, %arg6: memref<1x8x128xf32, #tpu.memory_space<vmem>>) attributes {dimension_semantics = [#tpu.dimension_semantics<parallel>, #tpu.dimension_semantics<arbitrary>], iteration_bounds = array<i64: 2, 1>, scalar_prefetch = 0 : i64, scratch_operands = 0 : i64, tpu.core_type = #tpu.core_type<tc>, window_params = [{transform_indices = @transform_0, window_bounds = array<i64: 40, 128>}, {pipeline_mode = #tpu.pipeline_mode<synchronous>, transform_indices = @transform_1, window_bounds = array<i64: 8, 40>}, {transform_indices = @transform_2, window_bounds = array<i64: 8, 128>}, {transform_indices = @transform_3, window_bounds = array<i64: 1, 8, 128>}, {transform_indices = @transform_4, window_bounds = array<i64: 1, 8, 128>}]} {
    %c0_i32 = arith.constant 0 : i32
    %0 = arith.cmpi eq, %arg1, %c0_i32 : i32
    %1 = arith.extui %0 : i1 to i32
    %c0_i32_0 = arith.constant 0 : i32
    %2 = arith.cmpi ne, %1, %c0_i32_0 : i32
    scf.if %2 {
      %cst_20 = arith.constant 0.000000e+00 : f32
      %31 = vector.broadcast %cst_20 : f32 to vector<1x8x128xf32>
      %c0_21 = arith.constant 0 : index
      %c0_22 = arith.constant 0 : index
      %c0_23 = arith.constant 0 : index
      %32 = vector.load %arg5[%c0_21, %c0_22, %c0_23] : memref<1x8x128xf32, #tpu.memory_space<vmem>>, vector<1x8x128xf32>
      tpu.vector_store %arg5[%c0_21, %c0_22, %c0_23], %31 {strides = array<i32>} : memref<1x8x128xf32, #tpu.memory_space<vmem>>, vector<1x8x128xf32>,
      %cst_24 = arith.constant 0.000000e+00 : f32
      %33 = vector.broadcast %cst_24 : f32 to vector<1x8x128xf32>
      %c0_25 = arith.constant 0 : index
      %c0_26 = arith.constant 0 : index
      %c0_27 = arith.constant 0 : index
      %34 = vector.load %arg6[%c0_25, %c0_26, %c0_27] : memref<1x8x128xf32, #tpu.memory_space<vmem>>, vector<1x8x128xf32>
      tpu.vector_store %arg6[%c0_25, %c0_26, %c0_27], %33 {strides = array<i32>} : memref<1x8x128xf32, #tpu.memory_space<vmem>>, vector<1x8x128xf32>,
    } else {
    }
    %c0 = arith.constant 0 : index
    %c0_1 = arith.constant 0 : index
    %3 = vector.load %arg3[%c0, %c0_1] : memref<8x40xbf16, #tpu.memory_space<vmem>>, vector<8x40xbf16>
    %c0_2 = arith.constant 0 : index
    %c0_3 = arith.constant 0 : index
    %4 = vector.load %arg2[%c0_2, %c0_3] : memref<40x128xbf16, #tpu.memory_space<vmem>>, vector<40x128xbf16>
    %cst = arith.constant dense<0.000000e+00> : vector<8x128xf32>
    %5 = tpu.matmul %3, %4, %cst {dimension_numbers = #tpu.dot_dimension_numbers<[1], [0], [0], [1], [0, 0, 1, 1], [], []>} : vector<8x40xbf16>, vector<40x128xbf16>, vector<8x128xf32> -> vector<8x128xf32>
    %6 = arith.truncf %5 : vector<8x128xf32> to vector<8x128xbf16>
    %c0_4 = arith.constant 0 : index
    %c0_5 = arith.constant 0 : index
    %7 = vector.load %arg4[%c0_4, %c0_5] : memref<8x128xbf16, #tpu.memory_space<vmem>>, vector<8x128xbf16>
    tpu.vector_store %arg4[%c0_4, %c0_5], %6 {strides = array<i32>} : memref<8x128xbf16, #tpu.memory_space<vmem>>, vector<8x128xbf16>,
    %c1_i32 = arith.constant 1 : i32
    %8 = arith.muli %arg0, %c1_i32 : i32
    %9 = arith.addi %8, %arg1 : i32
    %10 = tpu.iota {dimensions = array<i32: 1>} : vector<8x128xi32>
    %c128_i32 = arith.constant 128 : i32
    %11 = arith.muli %9, %c128_i32 : i32
    %12 = vector.broadcast %11 : i32 to vector<8x128xi32>
    %13 = arith.addi %10, %12 : vector<8x128xi32>
    %c192_i32 = arith.constant 192 : i32
    %14 = vector.broadcast %c192_i32 : i32 to vector<8x128xi32>
    %15 = arith.cmpi slt, %13, %14 : vector<8x128xi32>
    %c128_i32_6 = arith.constant 128 : i32
    %16 = arith.muli %arg0, %c128_i32_6 : i32
    %17 = vector.broadcast %16 : i32 to vector<8x128xi32>
    %18 = arith.cmpi sge, %13, %17 : vector<8x128xi32>
    %19 = arith.andi %15, %18 : vector<8x128xi1>
    %cst_7 = arith.constant 0.000000e+00 : f32
    %20 = vector.broadcast %cst_7 : f32 to vector<8x128xf32>
    %21 = arith.select %19, %5, %20 : vector<8x128xi1>, vector<8x128xf32>
    %c0_8 = arith.constant 0 : index
    %c0_9 = arith.constant 0 : index
    %c0_10 = arith.constant 0 : index
    %22 = vector.load %arg5[%c0_8, %c0_9, %c0_10] : memref<1x8x128xf32, #tpu.memory_space<vmem>>, vector<1x8x128xf32>
    %23 = vector.shape_cast %21 : vector<8x128xf32> to vector<1x8x128xf32>
    %24 = arith.addf %22, %23 : vector<1x8x128xf32>
    %c0_11 = arith.constant 0 : index
    %c0_12 = arith.constant 0 : index
    %c0_13 = arith.constant 0 : index
    %25 = vector.load %arg5[%c0_11, %c0_12, %c0_13] : memref<1x8x128xf32, #tpu.memory_space<vmem>>, vector<1x8x128xf32>
    tpu.vector_store %arg5[%c0_11, %c0_12, %c0_13], %24 {strides = array<i32>} : memref<1x8x128xf32, #tpu.memory_space<vmem>>, vector<1x8x128xf32>,
    %c0_14 = arith.constant 0 : index
    %c0_15 = arith.constant 0 : index
    %c0_16 = arith.constant 0 : index
    %26 = vector.load %arg6[%c0_14, %c0_15, %c0_16] : memref<1x8x128xf32, #tpu.memory_space<vmem>>, vector<1x8x128xf32>
    %27 = arith.mulf %21, %21 : vector<8x128xf32>
    %28 = vector.shape_cast %27 : vector<8x128xf32> to vector<1x8x128xf32>
    %29 = arith.addf %26, %28 : vector<1x8x128xf32>
    %c0_17 = arith.constant 0 : index
    %c0_18 = arith.constant 0 : index
    %c0_19 = arith.constant 0 : index
    %30 = vector.load %arg6[%c0_17, %c0_18, %c0_19] : memref<1x8x128xf32, #tpu.memory_space<vmem>>, vector<1x8x128xf32>
    tpu.vector_store %arg6[%c0_17, %c0_18, %c0_19], %29 {strides = array<i32>} : memref<1x8x128xf32, #tpu.memory_space<vmem>>, vector<1x8x128xf32>,
    return
  }
  func.func @transform_0(%arg0: i32, %arg1: i32) -> (i32, i32) {
    %c1_i32 = arith.constant 1 : i32
    %0 = arith.muli %arg0, %c1_i32 : i32
    %1 = arith.addi %0, %arg1 : i32
    %c0_i32 = arith.constant 0 : i32
    %c0_i32_0 = arith.constant 0 : i32
    return %c0_i32, %1 : i32, i32
  }
  func.func @transform_1(%arg0: i32, %arg1: i32) -> (i32, i32) {
    %c0_i32 = arith.constant 0 : i32
    %c0_i32_0 = arith.constant 0 : i32
    %c0_i32_1 = arith.constant 0 : i32
    return %c0_i32, %c0_i32_0 : i32, i32
  }
  func.func @transform_2(%arg0: i32, %arg1: i32) -> (i32, i32) {
    %c1_i32 = arith.constant 1 : i32
    %0 = arith.muli %arg0, %c1_i32 : i32
    %1 = arith.addi %0, %arg1 : i32
    %c0_i32 = arith.constant 0 : i32
    %c0_i32_0 = arith.constant 0 : i32
    return %c0_i32, %1 : i32, i32
  }
  func.func @transform_3(%arg0: i32, %arg1: i32) -> (i32, i32, i32) {
    %c0_i32 = arith.constant 0 : i32
    %c0_i32_0 = arith.constant 0 : i32
    %c0_i32_1 = arith.constant 0 : i32
    return %arg0, %c0_i32, %c0_i32_0 : i32, i32, i32
  }
  func.func @transform_4(%arg0: i32, %arg1: i32) -> (i32, i32, i32) {
    %c0_i32 = arith.constant 0 : i32
    %c0_i32_0 = arith.constant 0 : i32
    %c0_i32_1 = arith.constant 0 : i32
    return %arg0, %c0_i32, %c0_i32_0 : i32, i32, i32
  }
}

module attributes {stable_mosaic.version = 11 : i64} {
  func.func @_bn_prelu_kernel(%arg0: i32, %arg1: memref<8x128xbf16, #tpu.memory_space<vmem>>, %arg2: memref<3x8x1xf32, #tpu.memory_space<vmem>>, %arg3: memref<8x128xf32, #tpu.memory_space<vmem>>) attributes {dimension_semantics = [#tpu.dimension_semantics<parallel>], iteration_bounds = array<i64: 2>, scalar_prefetch = 0 : i64, scratch_operands = 0 : i64, tpu.core_type = #tpu.core_type<tc>, window_params = [{transform_indices = @transform_0, window_bounds = array<i64: 8, 128>}, {pipeline_mode = #tpu.pipeline_mode<synchronous>, transform_indices = @transform_1, window_bounds = array<i64: 3, 8, 1>}, {transform_indices = @transform_2, window_bounds = array<i64: 8, 128>}]} {
    %c0 = arith.constant 0 : index
    %c0_0 = arith.constant 0 : index
    %0 = vector.load %arg1[%c0, %c0_0] : memref<8x128xbf16, #tpu.memory_space<vmem>>, vector<8x128xbf16>
    %1 = arith.extf %0 : vector<8x128xbf16> to vector<8x128xf32>
    %c0_1 = arith.constant 0 : index
    %c0_2 = arith.constant 0 : index
    %c0_3 = arith.constant 0 : index
    %2 = vector.load %arg2[%c0_1, %c0_2, %c0_3] : memref<3x8x1xf32, #tpu.memory_space<vmem>>, vector<1x8x1xf32>
    %3 = vector.shape_cast %2 : vector<1x8x1xf32> to vector<8x1xf32>
    %4 = vector.broadcast %3 : vector<8x1xf32> to vector<8x128xf32>
    %5 = arith.mulf %1, %4 : vector<8x128xf32>
    %c1 = arith.constant 1 : index
    %c0_4 = arith.constant 0 : index
    %c0_5 = arith.constant 0 : index
    %6 = vector.load %arg2[%c1, %c0_4, %c0_5] : memref<3x8x1xf32, #tpu.memory_space<vmem>>, vector<1x8x1xf32>
    %7 = vector.shape_cast %6 : vector<1x8x1xf32> to vector<8x1xf32>
    %8 = vector.broadcast %7 : vector<8x1xf32> to vector<8x128xf32>
    %9 = arith.addf %5, %8 : vector<8x128xf32>
    %cst = arith.constant 0.000000e+00 : f32
    %10 = vector.broadcast %cst : f32 to vector<8x128xf32>
    %11 = arith.cmpf oge, %9, %10 : vector<8x128xf32>
    %c2 = arith.constant 2 : index
    %c0_6 = arith.constant 0 : index
    %c0_7 = arith.constant 0 : index
    %12 = vector.load %arg2[%c2, %c0_6, %c0_7] : memref<3x8x1xf32, #tpu.memory_space<vmem>>, vector<1x8x1xf32>
    %13 = vector.shape_cast %12 : vector<1x8x1xf32> to vector<8x1xf32>
    %14 = vector.broadcast %13 : vector<8x1xf32> to vector<8x128xf32>
    %15 = arith.mulf %14, %9 : vector<8x128xf32>
    %16 = arith.select %11, %9, %15 : vector<8x128xi1>, vector<8x128xf32>
    %c0_8 = arith.constant 0 : index
    %c0_9 = arith.constant 0 : index
    %17 = vector.load %arg3[%c0_8, %c0_9] : memref<8x128xf32, #tpu.memory_space<vmem>>, vector<8x128xf32>
    tpu.vector_store %arg3[%c0_8, %c0_9], %16 {strides = array<i32>} : memref<8x128xf32, #tpu.memory_space<vmem>>, vector<8x128xf32>,
    return
  }
  func.func @transform_0(%arg0: i32) -> (i32, i32) {
    %c0_i32 = arith.constant 0 : i32
    %c0_i32_0 = arith.constant 0 : i32
    return %c0_i32, %arg0 : i32, i32
  }
  func.func @transform_1(%arg0: i32) -> (i32, i32, i32) {
    %c0_i32 = arith.constant 0 : i32
    %c0_i32_0 = arith.constant 0 : i32
    %c0_i32_1 = arith.constant 0 : i32
    %c0_i32_2 = arith.constant 0 : i32
    return %c0_i32, %c0_i32_0, %c0_i32_1 : i32, i32, i32
  }
  func.func @transform_2(%arg0: i32) -> (i32, i32) {
    %c0_i32 = arith.constant 0 : i32
    %c0_i32_0 = arith.constant 0 : i32
    return %c0_i32, %arg0 : i32, i32
  }
}

</mosaic_0001>

<llo_original>
// kernel: conv_block_forward.3
$region0: #{conv_block_forward.3}
  #allocation0 [shape = 'u32[]', space=smem, size = 0x4, offset = 0x4, fixed_abs, tag = 'smem constant byte address 0x4 - core index']
  #allocation1 [shape = 'u32[144,128]{1,0:T(1,128)}', space=vmem, size = 0x12000, scoped, tag = 'internal scratch']
  %s0 = inlined_call_operand.vmem [shape: bf16[8,192], index: 0, kind: input, shape index: {}]
  %s1 = inlined_call_operand.vmem [shape: f32[3,8,1], index: 1, kind: input, shape index: {}]
  %s2 = inlined_call_operand.vmem [shape: f32[8,192], index: 2, kind: output, shape index: {}]
  %s3 = sld [smem:[#allocation0]]
  $region41: #{conv_block_forward.3} parent=0
    _
  %s5 = ssub.s32 1, %s3
  %s6 = scalar_select 0, %s5, %s3
  loop: start=0, step=1, limit=4
  $region2: #{conv_block_forward.3} parent=0 // loop_pre_header
    _
  $region3: #{conv_block_forward.3} parent=0 // loop_header
    %s8 = sphi 0, %s12
    %p9 = scmp.ge.s32.totalorder %s8, 4
    %s18 = sphi 0, %s20
    %s21 = sphi 0, %s18
    %s22 = sphi 0, %s21
    %s38 = sphi 0, %s22
    %s42 = sphi 0, %s42
    %s44 = sphi 0, %s42
    %s45 = sphi 0, %s44
    %s59 = sphi 0, %s45
    %s65 = sphi 0, %s67
    %s68 = sphi 0, %s65
    %s69 = sphi 0, %s68
    %s85 = sphi 0, %s69
  $region4: #{conv_block_forward.3} parent=0 // loop_header_branch
    %11 = sbr.rel (%p9) target = $region8
  $region5: #{conv_block_forward.3} parent=0 // loop_body
    %s13 = ssub.s32 %s8, 1
    %s14 = ssub.s32 %s8, 2
    %s15 = sadd.s32 %s8, 1
    %s16 = ssub.s32 %s8, %s15
    %p17 = scmp.eq.s32.totalorder %s16, 0
    %s19 = sadd.s32 %s18, 1
    %s20 = scalar_select %p17, %s18, %s19
    %p23 = pneg %p17
    %p24 = scmp.eq.s32.totalorder %s8, 1
    %p25 = por %p23, %p24
    %p26 = scmp.ne.s32.totalorder %s18, %s21
    %p27 = scmp.eq.s32.totalorder %s8, 0
    %p28 = por %p26, %p27
    %p29 = scmp.ne.s32.totalorder %s18, %s21
    %p30 = scmp.eq.s32.totalorder %s13, 1
    %p31 = por %p29, %p30
    %p32 = scmp.ne.s32.totalorder %s21, %s22
    %p33 = scmp.eq.s32.totalorder %s13, 0
    %p34 = por %p32, %p33
    %p35 = scmp.ne.s32.totalorder %s21, %s22
    %p36 = scmp.eq.s32.totalorder %s14, 1
    %p37 = por %p35, %p36
    %p39 = scmp.ne.s32.totalorder %s22, %s38
    %p40 = scmp.eq.s32.totalorder %s14, 0
    %p41 = por %p39, %p40
    %s43 = sadd.s32 %s42, 1
    %p46 = scmp.eq.s32.totalorder %s8, 1
    %p47 = scmp.ne.s32.totalorder %s42, %s44
    %p48 = scmp.eq.s32.totalorder %s8, 0
    %p49 = por %p47, %p48
    %p50 = scmp.ne.s32.totalorder %s42, %s44
    %p51 = scmp.eq.s32.totalorder %s13, 1
    %p52 = por %p50, %p51
    %p53 = scmp.ne.s32.totalorder %s44, %s45
    %p54 = scmp.eq.s32.totalorder %s13, 0
    %p55 = por %p53, %p54
    %p56 = scmp.ne.s32.totalorder %s44, %s45
    %p57 = scmp.eq.s32.totalorder %s14, 1
    %p58 = por %p56, %p57
    %p60 = scmp.ne.s32.totalorder %s45, %s59
    %p61 = scmp.eq.s32.totalorder %s14, 0
    %p62 = por %p60, %p61
    %s63 = ssub.s32 %s8, %s15
    %p64 = scmp.eq.s32.totalorder %s63, 0
    %s66 = sadd.s32 %s65, 1
    %s67 = scalar_select %p64, %s65, %s66
    %p70 = pneg %p64
    %p71 = scmp.eq.s32.totalorder %s8, 1
    %p72 = por %p70, %p71
    %p73 = scmp.ne.s32.totalorder %s65, %s68
    %p74 = scmp.eq.s32.totalorder %s8, 0
    %p75 = por %p73, %p74
    %p76 = scmp.ne.s32.totalorder %s65, %s68
    %p77 = scmp.eq.s32.totalorder %s13, 1
    %p78 = por %p76, %p77
    %p79 = scmp.ne.s32.totalorder %s68, %s69
    %p80 = scmp.eq.s32.totalorder %s13, 0
    %p81 = por %p79, %p80
    %p82 = scmp.ne.s32.totalorder %s68, %s69
    %p83 = scmp.eq.s32.totalorder %s14, 1
    %p84 = por %p82, %p83
    %p86 = scmp.ne.s32.totalorder %s69, %s85
    %p87 = scmp.eq.s32.totalorder %s14, 0
    %p88 = por %p86, %p87
    %p89 = scmp.le.s32.totalorder 1, %s8
    %p90 = scmp.lt.s32.totalorder %s8, 3
    %p91 = pnand %p89, %p90
    %p92 = pneg %p91
    // Predicated region
    $region9: #{conv_block_forward.3} parent=5 // pred_check
      _
    $region10: #{conv_block_forward.3} parent=5 // pred_check_branch
      %94 = sbr.rel (%p91) target = $region12
    $region11: #{conv_block_forward.3} parent=5 // pred_region
      %s95 = ssub.s32 %s8, 1
      // Predicated region
      $region13: #{conv_block_forward.3} parent=11 // pred_check
        %p96 = pneg %p55
      $region14: #{conv_block_forward.3} parent=11 // pred_check_branch
        %98 = sbr.rel (%p96) target = $region16
      $region15: #{conv_block_forward.3} parent=11 // pred_region
        _
      $region16: #{conv_block_forward.3} parent=11 // pred_fallthru
        _
    $region12: #{conv_block_forward.3} parent=5 // pred_fallthru
      _
    %p99 = scmp.lt.s32.totalorder %s8, 2
    // Predicated region
    $region17: #{conv_block_forward.3} parent=5 // pred_check
      %p100 = pneg %p99
    $region18: #{conv_block_forward.3} parent=5 // pred_check_branch
      %102 = sbr.rel (%p100) target = $region20
    $region19: #{conv_block_forward.3} parent=5 // pred_region
      // Predicated region
      $region21: #{conv_block_forward.3} parent=19 // pred_check
        %p103 = pneg %p28
      $region22: #{conv_block_forward.3} parent=19 // pred_check_branch
        %105 = sbr.rel (%p103) target = $region24
      $region23: #{conv_block_forward.3} parent=19 // pred_region
        %p106 = scmp.lt.s32.totalorder %s8, 1
        %s107 = scalar_select %p106, %s8, 1
        %s108 = smul.addr %s107, 4
        %s109 = scalar_lea.vmem %s0, %s108
      $region24: #{conv_block_forward.3} parent=19 // pred_fallthru
        _
    $region20: #{conv_block_forward.3} parent=5 // pred_fallthru
      _
    %p110 = scmp.le.s32.totalorder 1, %s8
    %p111 = scmp.lt.s32.totalorder %s8, 3
    %p112 = pnand %p110, %p111
    %p113 = pneg %p112
    // Predicated region
    $region25: #{conv_block_forward.3} parent=5 // pred_check
      _
    $region26: #{conv_block_forward.3} parent=5 // pred_check_branch
      %115 = sbr.rel (%p112) target = $region28
    $region27: #{conv_block_forward.3} parent=5 // pred_region
      %s116 = ssub.s32 %s8, 1
      %p117 = scmp.lt.s32.totalorder %s13, 1
      %s118 = scalar_select %p117, %s13, 1
      %s119 = smul.addr %s118, 4
      %s120 = scalar_lea.vmem %s0, %s119
      %p121 = pneg %p34
      %p122 = pneg %p31
      %p123 = pneg %p55
      %p124 = pneg %p52
      %p125 = pneg %p81
      %p126 = pneg %p78
      %p127 = scmp.lt.s32.totalorder %s13, 1
      %s128 = scalar_select %p127, %s13, 1
      %s129 = smul.addr %s128, 8
      %s130 = scalar_lea.vmem %s2, %s129
      %p131 = scmp.lt.s32.totalorder %s13, 1
      %s132 = scalar_select %p131, %s13, 1
      %s133 = smul.addr %s132, 4
      %s134 = scalar_lea.vmem %s0, %s133
      %p135 = scmp.lt.s32.totalorder %s13, 1
      %s136 = scalar_select %p135, %s13, 1
      %s137 = smul.addr %s136, 8
      %s138 = scalar_lea.vmem %s2, %s137
      %v139 = vld [vmem:[%s134] sm:$0xf]
      %v140 = vunpack.c.l.bf16 %v139
      %v141 = vld [vmem:[%s1] sm:$0xff]
      %143 = vset.pattern.permute.xlu0 0
      %144 = vperm.xlu0 %143, %v141
      %v145 = vpop.permute.xlu0 %144
      %v147 = vmul.f32 %v140, %v145
      %s148 = scalar_lea.vmem %s1, 8
      %v149 = vld [vmem:[%s148] sm:$0xff]
      %151 = vset.pattern.permute.xlu0 0
      %152 = vperm.xlu0 %151, %v149
      %v153 = vpop.permute.xlu0 %152
      %v155 = vadd.f32 %v147, %v153
      %vm156 = vcmp.ge.f32.partialorder %v155, 0.0
      %s157 = scalar_lea.vmem %s1, 16
      %v158 = vld [vmem:[%s157] sm:$0xff]
      %160 = vset.pattern.permute.xlu0 0
      %161 = vperm.xlu0 %160, %v158
      %v162 = vpop.permute.xlu0 %161
      %v164 = vmul.f32 %v162, %v155
      %v165 = vsel %vm156, %v155, %v164
      %166 = vst [vmem:[%s138] sm:$0xff] %v165
      %p167 = scmp.lt.s32.totalorder %s13, 1
      %s168 = scalar_select %p167, %s13, 1
      %s169 = smul.addr %s168, 8
      %s170 = scalar_lea.vmem %s2, %s169
      // Predicated region
      $region29: #{conv_block_forward.3} parent=27 // pred_check
        %p171 = pneg %p78
      $region30: #{conv_block_forward.3} parent=27 // pred_check_branch
        %173 = sbr.rel (%p171) target = $region32
      $region31: #{conv_block_forward.3} parent=27 // pred_region
        _
      $region32: #{conv_block_forward.3} parent=27 // pred_fallthru
        _
    $region28: #{conv_block_forward.3} parent=5 // pred_fallthru
      _
    %p174 = scmp.le.s32.totalorder 2, %s8
    // Predicated region
    $region33: #{conv_block_forward.3} parent=5 // pred_check
      %p175 = pneg %p174
    $region34: #{conv_block_forward.3} parent=5 // pred_check_branch
      %177 = sbr.rel (%p175) target = $region36
    $region35: #{conv_block_forward.3} parent=5 // pred_region
      %s178 = ssub.s32 %s8, 2
      // Predicated region
      $region37: #{conv_block_forward.3} parent=35 // pred_check
        %p179 = pneg %p84
      $region38: #{conv_block_forward.3} parent=35 // pred_check_branch
        %181 = sbr.rel (%p179) target = $region40
      $region39: #{conv_block_forward.3} parent=35 // pred_region
        %p182 = scmp.lt.s32.totalorder %s14, 1
        %s183 = scalar_select %p182, %s14, 1
        %s184 = smul.addr %s183, 8
        %s185 = scalar_lea.vmem %s2, %s184
      $region40: #{conv_block_forward.3} parent=35 // pred_fallthru
        _
    $region36: #{conv_block_forward.3} parent=5 // pred_fallthru
      _
  $region6: #{conv_block_forward.3} parent=0 // loop_footer
    %s12 = sadd.s32 1, %s8
  $region7: #{conv_block_forward.3} parent=0 // loop_footer_branch
    %7 = sbr.rel target = $region3
  $region8: #{conv_block_forward.3} parent=0 // loop_exit
    _

// kernel: conv_block_forward.2
$region0: #{conv_block_forward.2}
  #allocation0 [shape = 'u32[]', space=smem, size = 0x4, offset = 0x4, fixed_abs, tag = 'smem constant byte address 0x4 - core index']
  #allocation1 [shape = 'u32[144,128]{1,0:T(1,128)}', space=vmem, size = 0x12000, scoped, tag = 'internal scratch']
  %s0 = inlined_call_operand.vmem [shape: bf16[40,192], index: 0, kind: input, shape index: {}]
  %s1 = inlined_call_operand.vmem [shape: bf16[8,40], index: 1, kind: input, shape index: {}]
  %s2 = inlined_call_operand.vmem [shape: bf16[8,192], index: 2, kind: output, shape index: {0}]
  %s3 = inlined_call_operand.vmem [shape: f32[2,8,128], index: 3, kind: output, shape index: {1}]
  %s4 = inlined_call_operand.vmem [shape: f32[2,8,128], index: 4, kind: output, shape index: {2}]
  %5 = xla_tuple %s2, %s3, %s4
  %s6 = sld [smem:[#allocation0]]
  $region102: #{conv_block_forward.2} parent=0
    _
  %s8 = ssub.s32 1, %s6
  %s9 = scalar_select 0, %s8, %s6
  $region1: #{conv_block_forward.2} parent=0
    #allocation2 [shape = 'u8[20480]{0}', space=vmem, size = 0x5000, scoped, tag = 'input window, operand 0']
    loop: start=0, step=1, limit=4
    $region2: #{conv_block_forward.2} parent=1 // loop_pre_header
      _
    $region3: #{conv_block_forward.2} parent=1 // loop_header
      %s11 = sphi 0, %s15
      %p12 = scmp.ge.s32.totalorder %s11, 4
      %s18 = sphi 0, %s30
      %s19 = sphi 0, %s26
      %s20 = sphi 0, %s18
      %s21 = sphi 0, %s19
      %s22 = sphi 0, %s20
      %s23 = sphi 0, %s21
      %s35 = sphi 0, %s37
      %s38 = sphi 0, %s35
      %s39 = sphi 0, %s38
      %s55 = sphi 0, %s39
      %s59 = sphi 0, %s59
      %s61 = sphi 0, %s59
      %s62 = sphi 0, %s61
      %s76 = sphi 0, %s62
      %s84 = sphi 0, %s86
      %s87 = sphi 0, %s84
      %s88 = sphi 0, %s87
      %s104 = sphi 0, %s88
      %s110 = sphi 0, %s112
      %s113 = sphi 0, %s110
      %s114 = sphi 0, %s113
      %s130 = sphi 0, %s114
      %s136 = sphi 0, %s138
      %s139 = sphi 0, %s136
      %s140 = sphi 0, %s139
      %s156 = sphi 0, %s140
    $region4: #{conv_block_forward.2} parent=1 // loop_header_branch
      %14 = sbr.rel (%p12) target = $region8
    $region5: #{conv_block_forward.2} parent=1 // loop_body
      %s16 = ssub.s32 %s11, 1
      %s17 = ssub.s32 %s11, 2
      %s24 = sadd.s32 1, %s19
      %p25 = scmp.ge.s32.totalorder %s24, 1
      %s26 = scalar_select %p25, 0, %s24
      %s27 = sadd.s32 1, %s18
      %s28 = scalar_select %p25, %s27, %s18
      %p29 = scmp.ge.s32.totalorder %s28, 2
      %s30 = scalar_select %p29, 0, %s28
      %s31 = sadd.s32 %s18, %s19
      %s32 = sadd.s32 %s30, %s26
      %s33 = ssub.s32 %s31, %s32
      %p34 = scmp.eq.s32.totalorder %s33, 0
      %s36 = sadd.s32 %s35, 1
      %s37 = scalar_select %p34, %s35, %s36
      %p40 = pneg %p34
      %p41 = scmp.eq.s32.totalorder %s11, 1
      %p42 = por %p40, %p41
      %p43 = scmp.ne.s32.totalorder %s35, %s38
      %p44 = scmp.eq.s32.totalorder %s11, 0
      %p45 = por %p43, %p44
      %p46 = scmp.ne.s32.totalorder %s35, %s38
      %p47 = scmp.eq.s32.totalorder %s16, 1
      %p48 = por %p46, %p47
      %p49 = scmp.ne.s32.totalorder %s38, %s39
      %p50 = scmp.eq.s32.totalorder %s16, 0
      %p51 = por %p49, %p50
      %p52 = scmp.ne.s32.totalorder %s38, %s39
      %p53 = scmp.eq.s32.totalorder %s17, 1
      %p54 = por %p52, %p53
      %p56 = scmp.ne.s32.totalorder %s39, %s55
      %p57 = scmp.eq.s32.totalorder %s17, 0
      %p58 = por %p56, %p57
      %s60 = sadd.s32 %s59, 1
      %p63 = scmp.eq.s32.totalorder %s11, 1
      %p64 = scmp.ne.s32.totalorder %s59, %s61
      %p65 = scmp.eq.s32.totalorder %s11, 0
      %p66 = por %p64, %p65
      %p67 = scmp.ne.s32.totalorder %s59, %s61
      %p68 = scmp.eq.s32.totalorder %s16, 1
      %p69 = por %p67, %p68
      %p70 = scmp.ne.s32.totalorder %s61, %s62
      %p71 = scmp.eq.s32.totalorder %s16, 0
      %p72 = por %p70, %p71
      %p73 = scmp.ne.s32.totalorder %s61, %s62
      %p74 = scmp.eq.s32.totalorder %s17, 1
      %p75 = por %p73, %p74
      %p77 = scmp.ne.s32.totalorder %s62, %s76
      %p78 = scmp.eq.s32.totalorder %s17, 0
      %p79 = por %p77, %p78
      %s80 = sadd.s32 %s18, %s19
      %s81 = sadd.s32 %s30, %s26
      %s82 = ssub.s32 %s80, %s81
      %p83 = scmp.eq.s32.totalorder %s82, 0
      %s85 = sadd.s32 %s84, 1
      %s86 = scalar_select %p83, %s84, %s85
      %p89 = pneg %p83
      %p90 = scmp.eq.s32.totalorder %s11, 1
      %p91 = por %p89, %p90
      %p92 = scmp.ne.s32.totalorder %s84, %s87
      %p93 = scmp.eq.s32.totalorder %s11, 0
      %p94 = por %p92, %p93
      %p95 = scmp.ne.s32.totalorder %s84, %s87
      %p96 = scmp.eq.s32.totalorder %s16, 1
      %p97 = por %p95, %p96
      %p98 = scmp.ne.s32.totalorder %s87, %s88
      %p99 = scmp.eq.s32.totalorder %s16, 0
      %p100 = por %p98, %p99
      %p101 = scmp.ne.s32.totalorder %s87, %s88
      %p102 = scmp.eq.s32.totalorder %s17, 1
      %p103 = por %p101, %p102
      %p105 = scmp.ne.s32.totalorder %s88, %s104
      %p106 = scmp.eq.s32.totalorder %s17, 0
      %p107 = por %p105, %p106
      %s108 = ssub.s32 %s18, %s30
      %p109 = scmp.eq.s32.totalorder %s108, 0
      %s111 = sadd.s32 %s110, 1
      %s112 = scalar_select %p109, %s110, %s111
      %p115 = pneg %p109
      %p116 = scmp.eq.s32.totalorder %s11, 1
      %p117 = por %p115, %p116
      %p118 = scmp.ne.s32.totalorder %s110, %s113
      %p119 = scmp.eq.s32.totalorder %s11, 0
      %p120 = por %p118, %p119
      %p121 = scmp.ne.s32.totalorder %s110, %s113
      %p122 = scmp.eq.s32.totalorder %s16, 1
      %p123 = por %p121, %p122
      %p124 = scmp.ne.s32.totalorder %s113, %s114
      %p125 = scmp.eq.s32.totalorder %s16, 0
      %p126 = por %p124, %p125
      %p127 = scmp.ne.s32.totalorder %s113, %s114
      %p128 = scmp.eq.s32.totalorder %s17, 1
      %p129 = por %p127, %p128
      %p131 = scmp.ne.s32.totalorder %s114, %s130
      %p132 = scmp.eq.s32.totalorder %s17, 0
      %p133 = por %p131, %p132
      %s134 = ssub.s32 %s18, %s30
      %p135 = scmp.eq.s32.totalorder %s134, 0
      %s137 = sadd.s32 %s136, 1
      %s138 = scalar_select %p135, %s136, %s137
      %p141 = pneg %p135
      %p142 = scmp.eq.s32.totalorder %s11, 1
      %p143 = por %p141, %p142
      %p144 = scmp.ne.s32.totalorder %s136, %s139
      %p145 = scmp.eq.s32.totalorder %s11, 0
      %p146 = por %p144, %p145
      %p147 = scmp.ne.s32.totalorder %s136, %s139
      %p148 = scmp.eq.s32.totalorder %s16, 1
      %p149 = por %p147, %p148
      %p150 = scmp.ne.s32.totalorder %s139, %s140
      %p151 = scmp.eq.s32.totalorder %s16, 0
      %p152 = por %p150, %p151
      %p153 = scmp.ne.s32.totalorder %s139, %s140
      %p154 = scmp.eq.s32.totalorder %s17, 1
      %p155 = por %p153, %p154
      %p157 = scmp.ne.s32.totalorder %s140, %s156
      %p158 = scmp.eq.s32.totalorder %s17, 0
      %p159 = por %p157, %p158
      %p160 = scmp.le.s32.totalorder 1, %s11
      %p161 = scmp.lt.s32.totalorder %s11, 3
      %p162 = pnand %p160, %p161
      %p163 = pneg %p162
      // Predicated region
      $region9: #{conv_block_forward.2} parent=5 // pred_check
        _
      $region10: #{conv_block_forward.2} parent=5 // pred_check_branch
        %165 = sbr.rel (%p162) target = $region12
      $region11: #{conv_block_forward.2} parent=5 // pred_region
        %s166 = ssub.s32 %s11, 1
        // Predicated region
        $region13: #{conv_block_forward.2} parent=11 // pred_check
          %p167 = pneg %p72
        $region14: #{conv_block_forward.2} parent=11 // pred_check_branch
          %169 = sbr.rel (%p167) target = $region16
        $region15: #{conv_block_forward.2} parent=11 // pred_region
          _
        $region16: #{conv_block_forward.2} parent=11 // pred_fallthru
          _
      $region12: #{conv_block_forward.2} parent=5 // pred_fallthru
        _
      %p170 = scmp.lt.s32.totalorder %s11, 2
      // Predicated region
      $region17: #{conv_block_forward.2} parent=5 // pred_check
        %p171 = pneg %p170
      $region18: #{conv_block_forward.2} parent=5 // pred_check_branch
        %173 = sbr.rel (%p171) target = $region20
      $region19: #{conv_block_forward.2} parent=5 // pred_region
        // Predicated region
        $region21: #{conv_block_forward.2} parent=19 // pred_check
          %p174 = pneg %p45
        $region22: #{conv_block_forward.2} parent=19 // pred_check_branch
          %176 = sbr.rel (%p174) target = $region24
        $region23: #{conv_block_forward.2} parent=19 // pred_region
          %s177 = sand.u32 %s35, 1
          %s178 = sand.u32 %s35, 1
          %s179 = smul.addr %s178, 20
          %s180 = scalar_lea.vmem [#allocation2], %s179
          %s181 = sadd.s32 %s18, %s19
          %s182 = smul.addr %s181, 4
          %s183 = scalar_lea.vmem %s0, %s182
          // Predicated region
          $region25: #{conv_block_forward.2} parent=23 // pred_check
            _
          $region26: #{conv_block_forward.2} parent=23 // pred_check_branch
            %185 = sbr.rel (0) target = $region28
          $region27: #{conv_block_forward.2} parent=23 // pred_region
            // Predicated region
            $region29: #{conv_block_forward.2} parent=27 // pred_check
              _
            $region30: #{conv_block_forward.2} parent=27 // pred_check_branch
              %187 = sbr.rel target = $region32
            $region31: #{conv_block_forward.2} parent=27 // pred_region
              // Predicated region
              $region44: #{conv_block_forward.2} parent=31 // pred_check
                _
              $region45: #{conv_block_forward.2} parent=31 // pred_check_branch
                %211 = sbr.rel (0) target = $region47
              $region46: #{conv_block_forward.2} parent=31 // pred_region
                loop: start=0, step=1, limit=1
                $region48: #{conv_block_forward.2} parent=46 // loop_pre_header
                  _
                $region49: #{conv_block_forward.2} parent=46 // loop_header
                  %s213 = sphi 0, %s217
                  %p214 = scmp.ge.s32.totalorder %s213, 1
                  %s218 = sphi %s183, %s183
                  %s219 = sphi %s180, %s180
                $region50: #{conv_block_forward.2} parent=46 // loop_header_branch
                  %216 = sbr.rel (%p214) target = $region54
                $region51: #{conv_block_forward.2} parent=46 // loop_body
                  _
                $region52: #{conv_block_forward.2} parent=46 // loop_footer
                  %s217 = sadd.s32 1, %s213
                $region53: #{conv_block_forward.2} parent=46 // loop_footer_branch
                  %212 = sbr.rel target = $region49
                $region54: #{conv_block_forward.2} parent=46 // loop_exit
                  _
                %s221 = ssub.s32 16, 1
                loop: start=0, step=1, limit=1
                $region55: #{conv_block_forward.2} parent=46 // loop_pre_header
                  _
                $region56: #{conv_block_forward.2} parent=46 // loop_header
                  %s223 = sphi 0, %s227
                  %p224 = scmp.ge.s32.totalorder %s223, 1
                  %s228 = sphi %s183, %s183
                  %s229 = sphi %s180, %s180
                $region57: #{conv_block_forward.2} parent=46 // loop_header_branch
                  %226 = sbr.rel (%p224) target = $region61
                $region58: #{conv_block_forward.2} parent=46 // loop_body
                  %v230 = vld [vmem:[%s228] sm:%s221]
                  %231 = vst [vmem:[%s229] sm:%s221] %v230
                  %v232 = vld [vmem:[%s228 + $0x8] sm:%s221]
                  %233 = vst [vmem:[%s229 + $0x4] sm:%s221] %v232
                  %v234 = vld [vmem:[%s228 + $0x10] sm:%s221]
                  %235 = vst [vmem:[%s229 + $0x8] sm:%s221] %v234
                  %v236 = vld [vmem:[%s228 + $0x18] sm:%s221]
                  %237 = vst [vmem:[%s229 + $0xc] sm:%s221] %v236
                  %v238 = vld [vmem:[%s228 + $0x20] sm:%s221]
                  %239 = vst [vmem:[%s229 + $0x10] sm:%s221] %v238
                $region59: #{conv_block_forward.2} parent=46 // loop_footer
                  %s227 = sadd.s32 1, %s223
                $region60: #{conv_block_forward.2} parent=46 // loop_footer_branch
                  %222 = sbr.rel target = $region56
                $region61: #{conv_block_forward.2} parent=46 // loop_exit
                  _
              $region47: #{conv_block_forward.2} parent=31 // pred_fallthru
                _
            $region32: #{conv_block_forward.2} parent=27 // pred_fallthru
              _
            // Predicated region
            $region33: #{conv_block_forward.2} parent=27 // pred_check
              _
            $region34: #{conv_block_forward.2} parent=27 // pred_check_branch
              %189 = sbr.rel (0) target = $region36
            $region35: #{conv_block_forward.2} parent=27 // pred_region
              %s191 = ssub.s32 16, 1
              loop: start=0, step=1, limit=1
              $region37: #{conv_block_forward.2} parent=35 // loop_pre_header
                _
              $region38: #{conv_block_forward.2} parent=35 // loop_header
                %s193 = sphi 0, %s197
                %p194 = scmp.ge.s32.totalorder %s193, 1
                %s198 = sphi %s183, %s183
                %s199 = sphi %s180, %s180
              $region39: #{conv_block_forward.2} parent=35 // loop_header_branch
                %196 = sbr.rel (%p194) target = $region43
              $region40: #{conv_block_forward.2} parent=35 // loop_body
                %v200 = vld [vmem:[%s198] sm:%s191]
                %201 = vst [vmem:[%s199] sm:%s191] %v200
                %v202 = vld [vmem:[%s198 + $0x8] sm:%s191]
                %203 = vst [vmem:[%s199 + $0x4] sm:%s191] %v202
                %v204 = vld [vmem:[%s198 + $0x10] sm:%s191]
                %205 = vst [vmem:[%s199 + $0x8] sm:%s191] %v204
                %v206 = vld [vmem:[%s198 + $0x18] sm:%s191]
                %207 = vst [vmem:[%s199 + $0xc] sm:%s191] %v206
                %v208 = vld [vmem:[%s198 + $0x20] sm:%s191]
                %209 = vst [vmem:[%s199 + $0x10] sm:%s191] %v208
              $region41: #{conv_block_forward.2} parent=35 // loop_footer
                %s197 = sadd.s32 1, %s193
              $region42: #{conv_block_forward.2} parent=35 // loop_footer_branch
                %192 = sbr.rel target = $region38
              $region43: #{conv_block_forward.2} parent=35 // loop_exit
                _
            $region36: #{conv_block_forward.2} parent=27 // pred_fallthru
              _
          $region28: #{conv_block_forward.2} parent=23 // pred_fallthru
            _
          %240 = vnop
        $region24: #{conv_block_forward.2} parent=19 // pred_fallthru
          _
      $region20: #{conv_block_forward.2} parent=5 // pred_fallthru
        _
      %p241 = scmp.le.s32.totalorder 1, %s11
      %p242 = scmp.lt.s32.totalorder %s11, 3
      %p243 = pnand %p241, %p242
      %p244 = pneg %p243
      // Predicated region
      $region62: #{conv_block_forward.2} parent=5 // pred_check
        _
      $region63: #{conv_block_forward.2} parent=5 // pred_check_branch
        %246 = sbr.rel (%p243) target = $region65
      $region64: #{conv_block_forward.2} parent=5 // pred_region
        %s247 = ssub.s32 %s11, 1
        %s248 = sand.u32 %s38, 1
        %s249 = sand.u32 %s38, 1
        %s250 = smul.addr %s249, 20
        %s251 = scalar_lea.vmem [#allocation2], %s250
        // Predicated region
        $region66: #{conv_block_forward.2} parent=64 // pred_check
          %p252 = pneg %p51
        $region67: #{conv_block_forward.2} parent=64 // pred_check_branch
          %254 = sbr.rel (%p252) target = $region69
        $region68: #{conv_block_forward.2} parent=64 // pred_region
          _
        $region69: #{conv_block_forward.2} parent=64 // pred_fallthru
          _
        %s255 = sand.u32 %s38, 1
        %s256 = sand.u32 %s38, 1
        %s257 = smul.addr %s256, 20
        %s258 = scalar_lea.vmem [#allocation2], %s257
        %p259 = pneg %p51
        %p260 = pneg %p48
        %p261 = pneg %p72
        %p262 = pneg %p69
        %p263 = pneg %p100
        %p264 = pneg %p97
        %s265 = sadd.s32 %s20, %s21
        %p266 = scmp.lt.s32.totalorder %s265, 1
        %s267 = scalar_select %p266, %s265, 1
        %s268 = smul.addr %s267, 4
        %s269 = scalar_lea.vmem %s2, %s268
        %p270 = pneg %p126
        %p271 = pneg %p123
        %p272 = scmp.lt.s32.totalorder %s20, 1
        %s273 = scalar_select %p272, %s20, 1
        %s274 = smul.addr %s273, 8
        %s275 = scalar_lea.vmem %s3, %s274
        %p276 = pneg %p152
        %p277 = pneg %p149
        %p278 = scmp.lt.s32.totalorder %s20, 1
        %s279 = scalar_select %p278, %s20, 1
        %s280 = smul.addr %s279, 8
        %s281 = scalar_lea.vmem %s4, %s280
        %s282 = sadd.s32 %s20, %s21
        %s283 = sadd.s32 %s20, %s21
        %p284 = scmp.lt.s32.totalorder %s283, 1
        %s285 = scalar_select %p284, %s283, 1
        %s286 = smul.addr %s285, 4
        %s287 = scalar_lea.vmem %s2, %s286
        %s288 = sadd.s32 %s20, %s21
        %p289 = scmp.lt.s32.totalorder %s20, 1
        %s290 = scalar_select %p289, %s20, 1
        %s291 = smul.addr %s290, 8
        %s292 = scalar_lea.vmem %s3, %s291
        %p293 = scmp.lt.s32.totalorder %s20, 1
        %s294 = scalar_select %p293, %s20, 1
        %s295 = smul.addr %s294, 8
        %s296 = scalar_lea.vmem %s4, %s295
        %p298 = scmp.eq.s32.totalorder %s21, 0
        // Predicated region
        $region70: #{conv_block_forward.2} parent=64 // pred_check
          %p299 = pneg %p298
        $region71: #{conv_block_forward.2} parent=64 // pred_check_branch
          %301 = sbr.rel (%p299) target = $region73
        $region72: #{conv_block_forward.2} parent=64 // pred_region
          %302 = vst [vmem:[%s292] sm:$0xff] 0.0
          %303 = vst [vmem:[%s296] sm:$0xff] 0.0
        $region73: #{conv_block_forward.2} parent=64 // pred_fallthru
          _
        %v304 = vld [vmem:[%s1] sm:$0xf]
        %v305 = vld [vmem:[%s251] sm:$0xf]
        %v306 = vld [vmem:[%s251 + $0x4] sm:$0xf]
        %v307 = vld [vmem:[%s251 + $0x8] sm:$0xf]
        %v308 = vld [vmem:[%s251 + $0xc] sm:$0xf]
        %v309 = vld [vmem:[%s251 + $0x10] sm:$0xf]
        %v315 = vunpack.c.l.b16 %v305
        %v316 = vunpack.c.l.b16 %v306
        %v317 = vunpack.c.l.b16 %v307
        %v318 = vunpack.c.l.b16 %v308
        %v319 = vunpack.c.l.b16 %v309
        %v320 = vpack.c.b16 %v316, %v315
        %v321 = vpack.c.b16 %v318, %v317
        %v322 = vpack.c.b16 %v319, %v319
        %vm325 = vcmask 326656
        %v327 = vsel %vm325, %v304, 0
        %vm329 = vcmask 1043456
        %v331 = vsel %vm329, %v322, 0
        %333 = vmatprep.subr.bf16.mxu0 0
        %334 = vmatpush1.bf16.msra.mxu0 0
        %335 = vmatprep.subr.bf16.mxu0 0
        %336 = vmatpush1.bf16.msra.mxu0 0
        %337 = vmatprep.subr.bf16.mxu0 0
        %338 = vmatpush1.bf16.msra.mxu0 0
        %339 = vmatprep.subr.bf16.mxu0 0
        %340 = vmatpush1.bf16.msra.mxu0 0
        %341 = vmatprep.subr.bf16.mxu0 0
        %342 = vmatpush1.bf16.msra.mxu0 0
        %343 = vmatprep.subr.bf16.mxu0 0
        %344 = vmatpush1.bf16.msra.mxu0 %v331
        %345 = vmatprep.subr.bf16.mxu0 0
        %346 = vmatpush1.bf16.msra.mxu0 %v321
        %347 = vmatprep.subr.bf16.mxu0 0
        %348 = vmatpush1.bf16.msra.mxu0 %v320
        %349 = vmatprep.subr.bf16.mxu0 0
        %350 = vmatpush2.bf16.msra.mxu0 0
        %351 = vmatprep.subr.bf16.mxu0 0
        %352 = vmatpush2.bf16.msra.mxu0 0
        %353 = vmatprep.subr.bf16.mxu0 0
        %354 = vmatpush2.bf16.msra.mxu0 0
        %355 = vmatprep.subr.bf16.mxu0 0
        %356 = vmatpush2.bf16.msra.mxu0 0
        %357 = vmatprep.subr.bf16.mxu0 0
        %358 = vmatpush2.bf16.msra.mxu0 0
        %359 = vmatprep.subr.bf16.mxu0 0
        %360 = vmatpush2.bf16.msra.mxu0 0
        %361 = vmatprep.subr.bf16.mxu0 0
        %362 = vmatpush2.bf16.msra.mxu0 0
        %363 = vmatprep.subr.bf16.mxu0 0
        %364 = vmatpush2.bf16.msra.mxu0 0
        %365 = vmatprep.mubr.bf16.mxu0 0
        %366 = vmatmul.mubr.bf16.gmra.mxu0 %v327
        %v367 = vpop.f32.mrf.mxu0
        %v368 = vadd.f32 0.0, %v367
        %v369 = vpop.f32.mrf.mxu0
        %v370 = vpop.f32.mrf.mxu0
        %v371 = vpop.f32.mrf.mxu0
        %372 = vdwg.mxu0
        %v373 = vpack.c.bf16 %v368, %v368
        %374 = vst [vmem:[%s287] sm:$0xf] %v373
        %s375 = sadd.s32 %s20, %s21
        %v376 = vlaneseq
        %v377 = vand.u32 %v376, 127
        %s378 = smul.u32 %s375, 128
        %v379 = vstv %s378
        %v380 = vadd.s32 %v377, %v379
        %vm381 = vcmp.lt.s32.totalorder %v380, 192
        %s382 = smul.u32 %s20, 128
        %v383 = vstv %s382
        %vm384 = vcmp.ge.s32.totalorder %v380, %v383
        %vm385 = vmand %vm381, %vm384
        %v386 = vsel %vm385, %v368, 0.0
        %v387 = vld [vmem:[%s292] sm:$0xff]
        %v388 = vadd.f32 %v387, %v386
        %389 = vst [vmem:[%s292] sm:$0xff] %v388
        %v390 = vld [vmem:[%s296] sm:$0xff]
        %v391 = vmul.f32 %v386, %v386
        %v392 = vadd.f32 %v390, %v391
        %393 = vst [vmem:[%s296] sm:$0xff] %v392
        %s394 = sadd.s32 %s20, %s21
        %p395 = scmp.lt.s32.totalorder %s394, 1
        %s396 = scalar_select %p395, %s394, 1
        %s397 = smul.addr %s396, 4
        %s398 = scalar_lea.vmem %s2, %s397
        %p399 = scmp.lt.s32.totalorder %s20, 1
        %s400 = scalar_select %p399, %s20, 1
        %s401 = smul.addr %s400, 8
        %s402 = scalar_lea.vmem %s3, %s401
        %p403 = scmp.lt.s32.totalorder %s20, 1
        %s404 = scalar_select %p403, %s20, 1
        %s405 = smul.addr %s404, 8
        %s406 = scalar_lea.vmem %s4, %s405
        // Predicated region
        $region74: #{conv_block_forward.2} parent=64 // pred_check
          %p407 = pneg %p97
        $region75: #{conv_block_forward.2} parent=64 // pred_check_branch
          %409 = sbr.rel (%p407) target = $region77
        $region76: #{conv_block_forward.2} parent=64 // pred_region
          %s410 = sadd.s32 %s20, %s21
        $region77: #{conv_block_forward.2} parent=64 // pred_fallthru
          _
        // Predicated region
        $region78: #{conv_block_forward.2} parent=64 // pred_check
          %p411 = pneg %p123
        $region79: #{conv_block_forward.2} parent=64 // pred_check_branch
          %413 = sbr.rel (%p411) target = $region81
        $region80: #{conv_block_forward.2} parent=64 // pred_region
          _
        $region81: #{conv_block_forward.2} parent=64 // pred_fallthru
          _
        // Predicated region
        $region82: #{conv_block_forward.2} parent=64 // pred_check
          %p414 = pneg %p149
        $region83: #{conv_block_forward.2} parent=64 // pred_check_branch
          %416 = sbr.rel (%p414) target = $region85
        $region84: #{conv_block_forward.2} parent=64 // pred_region
          _
        $region85: #{conv_block_forward.2} parent=64 // pred_fallthru
          _
      $region65: #{conv_block_forward.2} parent=5 // pred_fallthru
        _
      %p417 = scmp.le.s32.totalorder 2, %s11
      // Predicated region
      $region86: #{conv_block_forward.2} parent=5 // pred_check
        %p418 = pneg %p417
      $region87: #{conv_block_forward.2} parent=5 // pred_check_branch
        %420 = sbr.rel (%p418) target = $region89
      $region88: #{conv_block_forward.2} parent=5 // pred_region
        %s421 = ssub.s32 %s11, 2
        // Predicated region
        $region90: #{conv_block_forward.2} parent=88 // pred_check
          %p422 = pneg %p103
        $region91: #{conv_block_forward.2} parent=88 // pred_check_branch
          %424 = sbr.rel (%p422) target = $region93
        $region92: #{conv_block_forward.2} parent=88 // pred_region
          %s425 = sadd.s32 %s22, %s23
          %p426 = scmp.lt.s32.totalorder %s425, 1
          %s427 = scalar_select %p426, %s425, 1
          %s428 = smul.addr %s427, 4
          %s429 = scalar_lea.vmem %s2, %s428
        $region93: #{conv_block_forward.2} parent=88 // pred_fallthru
          _
        // Predicated region
        $region94: #{conv_block_forward.2} parent=88 // pred_check
          %p430 = pneg %p129
        $region95: #{conv_block_forward.2} parent=88 // pred_check_branch
          %432 = sbr.rel (%p430) target = $region97
        $region96: #{conv_block_forward.2} parent=88 // pred_region
          %p433 = scmp.lt.s32.totalorder %s22, 1
          %s434 = scalar_select %p433, %s22, 1
          %s435 = smul.addr %s434, 8
          %s436 = scalar_lea.vmem %s3, %s435
        $region97: #{conv_block_forward.2} parent=88 // pred_fallthru
          _
        // Predicated region
        $region98: #{conv_block_forward.2} parent=88 // pred_check
          %p437 = pneg %p155
        $region99: #{conv_block_forward.2} parent=88 // pred_check_branch
          %439 = sbr.rel (%p437) target = $region101
        $region100: #{conv_block_forward.2} parent=88 // pred_region
          %p440 = scmp.lt.s32.totalorder %s22, 1
          %s441 = scalar_select %p440, %s22, 1
          %s442 = smul.addr %s441, 8
          %s443 = scalar_lea.vmem %s4, %s442
        $region101: #{conv_block_forward.2} parent=88 // pred_fallthru
          _
      $region89: #{conv_block_forward.2} parent=5 // pred_fallthru
        _
    $region6: #{conv_block_forward.2} parent=1 // loop_footer
      %s15 = sadd.s32 1, %s11
    $region7: #{conv_block_forward.2} parent=1 // loop_footer_branch
      %10 = sbr.rel target = $region3
    $region8: #{conv_block_forward.2} parent=1 // loop_exit
      _

</llo_original>
